<compile_context>
chip_gen: v5e
topology: v5e:2x2
jax: 0.10.0
libtpu: 0.0.40
codegen_flags: <defaults>
</compile_context>

<pallas_src>
import jax
import jax.numpy as jnp
from jax.experimental import pallas as pl
from jax.experimental.pallas import tpu as pltpu

LN_EPS = 1e-5  # nn.LayerNorm default eps


def encode_kernel(fp_ref, mol_ref, w_in_ref, w_mid_ref, w_out_ref,
                  sq_ref, vec_ref, out_ref):
    f32 = jnp.float32
    fp = fp_ref[...].astype(f32)
    mol = mol_ref[...].astype(f32)
    fp_dim = fp.shape[-1]
    u2 = sq_ref.shape[-1]          # unit2
    u12 = 2 * u2                   # unit1 == 2*unit2
    n_fc = (sq_ref.shape[0] - 2) // 2

    def dot(a, b):
        return jnp.dot(a, b, preferred_element_type=f32)

    def layernorm(x, g, b):
        # single-pass: var = E[x^2] - mu^2 -> two independent XLU reductions
        mu = jnp.mean(x, axis=-1, keepdims=True)
        ms = jnp.mean(x * x, axis=-1, keepdims=True)
        inv = jax.lax.rsqrt(ms - mu * mu + LN_EPS)
        return (x - mu) * inv * g + b

    # ---- fused fp/mol branches via block-diagonal weights ------------------
    # layer 1 (dense1 | dense3): sum of two dots into one 96-wide accumulator
    h = dot(fp, w_in_ref[:fp_dim, :]) + dot(mol, w_in_ref[fp_dim:, :]) \
        + vec_ref[0:1, :]                       # + [b1 | b3]
    h = jnp.maximum(h, 0.0)                     # (B, unit1+unit2)
    # layer 2 (dense2 | dense4): ONE matmul
    h = jnp.maximum(dot(h, w_mid_ref[...]) + vec_ref[1:2, :u12], 0.0)   # (B, 2*u2)
    # layer 3 (dense6 | dense7): ONE matmul
    h = dot(h, w_out_ref[...]) + vec_ref[2:3, :u12]                     # (B, 2*u2)

    # per-half LayerNorm (layernorm1 on fp half, layernorm2 on mol half)
    enc_fp = layernorm(h[:, :u2], vec_ref[3:4, :u2], vec_ref[4:5, :u2])
    enc_mol = layernorm(h[:, u2:u12], vec_ref[3:4, u2:u12], vec_ref[4:5, u2:u12])

    # dense5 over concat([enc_fp, alpha*enc_mol]) written as split dot+dot
    # (algebraically identical; single accumulator -> MRB accumulation on v7x)
    scaled = vec_ref[5:6, :u2] * enc_mol
    z = jnp.maximum(dot(enc_fp, sq_ref[0]) + dot(scaled, sq_ref[1])
                    + vec_ref[6:7, :u2], 0.0)

    # ---- packed, lane-dense output: [z | state0..state2 | enc_mol] ---------
    out_ref[:, 0:u2] = z.astype(out_ref.dtype)
    x = z
    for i in range(n_fc):  # static unroll over the 3 fc blocks
        x = jnp.maximum(dot(x, sq_ref[2 + 2 * i])
                        + vec_ref[7 + i:8 + i, :u2], 0.0)
        x = jnp.maximum(dot(x, sq_ref[3 + 2 * i])
                        + vec_ref[7 + n_fc + i:8 + n_fc + i, :u2], 0.0)
        out_ref[:, (i + 1) * u2:(i + 2) * u2] = x.astype(out_ref.dtype)
    out_ref[:, (n_fc + 1) * u2:(n_fc + 2) * u2] = enc_mol.astype(out_ref.dtype)


def encode_forward(encode_fp, encode_mol, packed):
    B = encode_fp.shape[0]
    sq = packed["sq"]
    u2 = sq.shape[-1]
    n_fc = (sq.shape[0] - 2) // 2
    out_w = (n_fc + 2) * u2

    args = (encode_fp, encode_mol, packed["w_in"], packed["w_mid"],
            packed["w_out"], sq, packed["vec"])

    # advisory cost hint for XLA's scheduler (tiny kernel)
    matmul_elems = (packed["w_in"].size + packed["w_mid"].size
                    + packed["w_out"].size + sq.size)
    cost = pl.CostEstimate(
        flops=int(2 * B * matmul_elems),
        transcendentals=int(2 * B),                       # two rsqrt per row
        bytes_accessed=int(4 * (sum(int(a.size) for a in args) + B * out_w)),
    )

    # Whole working set (< 100 KiB) fits in VMEM on every generation, so no
    # grid: each operand is a single full-array VMEM-resident block.
    out = pl.pallas_call(
        encode_kernel,
        out_shape=jax.ShapeDtypeStruct((B, out_w), jnp.float32),
        in_specs=[pl.BlockSpec(memory_space=pltpu.MemorySpace.VMEM)] * len(args),
        out_specs=pl.BlockSpec(memory_space=pltpu.MemorySpace.VMEM),
        cost_estimate=cost,
    )(*args)

    z = out[:, :u2]
    state = [out[:, (i + 1) * u2:(i + 2) * u2] for i in range(n_fc)]
    enc_mol = out[:, (n_fc + 1) * u2:(n_fc + 2) * u2]
    return z, state, enc_mol


def make_params(key, fp_dim, mf_dim, unit1, unit2, n_fc=3):
    """Deterministic synthetic parameters (shapes from Encode.__init__)."""
    ks = iter(jax.random.split(key, 32))

    def lin(k, d_in, d_out):
        kw, kb = jax.random.split(k)
        w = jax.random.normal(kw, (d_in, d_out), jnp.float32) * 0.1
        b = jax.random.normal(kb, (1, d_out), jnp.float32) * 0.1
        return w, b

    p = {}
    p["w1"], p["b1"] = lin(next(ks), fp_dim, unit1)      # dense1
    p["w2"], p["b2"] = lin(next(ks), unit1, unit2)       # dense2
    p["w6"], p["b6"] = lin(next(ks), unit2, unit2)       # dense6
    p["w3"], p["b3"] = lin(next(ks), mf_dim, unit2)      # dense3
    p["w4"], p["b4"] = lin(next(ks), unit2, unit2)       # dense4
    p["w7"], p["b7"] = lin(next(ks), unit2, unit2)       # dense7
    p["w5"], p["b5"] = lin(next(ks), unit1, unit2)       # dense5 (unit1 == 2*unit2)
    # non-trivial LayerNorm affine + alpha so packing indices are exercised
    p["g1"] = 1.0 + 0.1 * jax.random.normal(next(ks), (1, unit2), jnp.float32)
    p["be1"] = 0.1 * jax.random.normal(next(ks), (1, unit2), jnp.float32)
    p["g2"] = 1.0 + 0.1 * jax.random.normal(next(ks), (1, unit2), jnp.float32)
    p["be2"] = 0.1 * jax.random.normal(next(ks), (1, unit2), jnp.float32)
    p["alpha"] = 1.0 + 0.1 * jax.random.normal(next(ks), (1, unit2), jnp.float32)
    # fc_layers: 3 x (Linear, ReLU, Linear, ReLU)
    wfa, bfa, wfb, bfb = [], [], [], []
    for _ in range(n_fc):
        w, b = lin(next(ks), unit2, unit2); wfa.append(w); bfa.append(b)
        w, b = lin(next(ks), unit2, unit2); wfb.append(w); bfb.append(b)
    p["wfa"] = jnp.stack(wfa)   # [3, unit2, unit2]
    p["bfa"] = jnp.stack(bfa)   # [3, 1, unit2]
    p["wfb"] = jnp.stack(wfb)
    p["bfb"] = jnp.stack(bfb)
    return p


def pack_params(p):
    """One-time packing of the module params into a few lane-dense arrays."""
    f32 = jnp.float32
    fp_dim, u1 = p["w1"].shape
    mf_dim, u2 = p["w3"].shape
    n_fc = p["wfa"].shape[0]
    W = u1 + u2

    # block-diagonal branch weights
    w_in = jnp.zeros((fp_dim + mf_dim, u1 + u2), f32)
    w_in = w_in.at[:fp_dim, :u1].set(p["w1"]).at[fp_dim:, u1:].set(p["w3"])
    w_mid = jnp.zeros((u1 + u2, 2 * u2), f32)
    w_mid = w_mid.at[:u1, :u2].set(p["w2"]).at[u1:, u2:].set(p["w4"])
    w_out = jnp.zeros((2 * u2, 2 * u2), f32)
    w_out = w_out.at[:u2, :u2].set(p["w6"]).at[u2:, u2:].set(p["w7"])

    # square-weight stack: [W5_top, W5_bot, fc0_a, fc0_b, fc1_a, fc1_b, ...]
    sq = [p["w5"][:u2], p["w5"][u2:]]
    for i in range(n_fc):
        sq += [p["wfa"][i], p["wfb"][i]]
    sq = jnp.stack(sq)

    # vector pack (each row zero-padded to width unit1+unit2)
    def row(*pieces):
        v = jnp.concatenate([x.reshape(-1) for x in pieces]).astype(f32)
        return jnp.pad(v, (0, W - v.shape[0]))

    vec = jnp.stack(
        [row(p["b1"], p["b3"]),        # 0: [b1 | b3]
         row(p["b2"], p["b4"]),        # 1: [b2 | b4]
         row(p["b6"], p["b7"]),        # 2: [b6 | b7]
         row(p["g1"], p["g2"]),        # 3: [gamma1 | gamma2]
         row(p["be1"], p["be2"]),      # 4: [beta1 | beta2]
         row(p["alpha"]),              # 5: alpha
         row(p["b5"])]                 # 6: b5
        + [row(p["bfa"][i]) for i in range(n_fc)]    # 7..9
        + [row(p["bfb"][i]) for i in range(n_fc)])   # 10..12

    return {"w_in": w_in, "w_mid": w_mid, "w_out": w_out, "sq": sq, "vec": vec}


def encode_reference(encode_fp, encode_mol, p):
    """Pure-JAX reference mirroring the PyTorch forward, for verification."""
    def ln(x, g, b):
        mu = jnp.mean(x, -1, keepdims=True)
        var = jnp.mean((x - mu) ** 2, -1, keepdims=True)
        return (x - mu) / jnp.sqrt(var + LN_EPS) * g + b

    fp = jnp.maximum(encode_fp @ p["w1"] + p["b1"], 0.0)
    fp = jnp.maximum(fp @ p["w2"] + p["b2"], 0.0)
    fp = ln(fp @ p["w6"] + p["b6"], p["g1"], p["be1"])
    mol = jnp.maximum(encode_mol @ p["w3"] + p["b3"], 0.0)
    mol = jnp.maximum(mol @ p["w4"] + p["b4"], 0.0)
    mol = ln(mol @ p["w7"] + p["b7"], p["g2"], p["be2"])
    inputs = jnp.concatenate([fp, p["alpha"] * mol], axis=1)
    z = jnp.maximum(inputs @ p["w5"] + p["b5"], 0.0)
    x, state = z, []
    for i in range(p["wfa"].shape[0]):
        x = jnp.maximum(x @ p["wfa"][i] + p["bfa"][i], 0.0)
        x = jnp.maximum(x @ p["wfb"][i] + p["bfb"][i], 0.0)
        state.append(x)
    return z, state, mol


if __name__ == "__main__":
    # Small, self-consistent shapes: unit1 must equal 2*unit2 (see note above).
    B, fp_dim, mf_dim, unit2 = 8, 64, 48, 32
    unit1 = 2 * unit2

    key = jax.random.PRNGKey(0)
    k_fp, k_mol, k_par = jax.random.split(key, 3)
    encode_fp = jax.random.normal(k_fp, (B, fp_dim), jnp.float32)
    encode_mol = jax.random.normal(k_mol, (B, mf_dim), jnp.float32)
    params = make_params(k_par, fp_dim, mf_dim, unit1, unit2)
    packed = pack_params(params)   # pack once; reused across calls

    z, state, enc_mol = encode_forward(encode_fp, encode_mol, packed)
    jax.block_until_ready((z, state, enc_mol))

    # Verify against pure-JAX reference (f32 everywhere; fusion is exact up to
    # accumulation order, single-pass LN variance differs at ~1e-7).
    z_r, state_r, mol_r = encode_reference(encode_fp, encode_mol, params)
    assert jnp.allclose(z, z_r, atol=1e-4), "z mismatch"
    assert jnp.allclose(enc_mol, mol_r, atol=1e-4), "encode_mol mismatch"
    for a, b in zip(state, state_r):
        assert jnp.allclose(a, b, atol=1e-4), "state mismatch"

    print("KERNEL_OK")
</pallas_src>

<mosaic_0001>
module attributes {stable_mosaic.version = 11 : i64} {
  func.func @encode_kernel(%arg0: memref<8x64xf32, #tpu.memory_space<vmem>>, %arg1: memref<8x48xf32, #tpu.memory_space<vmem>>, %arg2: memref<112x96xf32, #tpu.memory_space<vmem>>, %arg3: memref<96x64xf32, #tpu.memory_space<vmem>>, %arg4: memref<64x64xf32, #tpu.memory_space<vmem>>, %arg5: memref<8x32x32xf32, #tpu.memory_space<vmem>>, %arg6: memref<13x96xf32, #tpu.memory_space<vmem>>, %arg7: memref<8x160xf32, #tpu.memory_space<vmem>>) attributes {dimension_semantics = [], scalar_prefetch = 0 : i64, scratch_operands = 0 : i64, tpu.core_type = #tpu.core_type<tc>} {
    %c0 = arith.constant 0 : index
    %c0_0 = arith.constant 0 : index
    %0 = vector.load %arg0[%c0, %c0_0] : memref<8x64xf32, #tpu.memory_space<vmem>>, vector<8x64xf32>
    %c0_1 = arith.constant 0 : index
    %c0_2 = arith.constant 0 : index
    %1 = vector.load %arg1[%c0_1, %c0_2] : memref<8x48xf32, #tpu.memory_space<vmem>>, vector<8x48xf32>
    %c0_3 = arith.constant 0 : index
    %c0_4 = arith.constant 0 : index
    %2 = vector.load %arg2[%c0_3, %c0_4] : memref<112x96xf32, #tpu.memory_space<vmem>>, vector<64x96xf32>
    %cst = arith.constant dense<0.000000e+00> : vector<8x96xf32>
    %3 = tpu.matmul %0, %2, %cst {dimension_numbers = #tpu.dot_dimension_numbers<[1], [0], [0], [1], [0, 0, 1, 1], [], []>} : vector<8x64xf32>, vector<64x96xf32>, vector<8x96xf32> -> vector<8x96xf32>
    %c64 = arith.constant 64 : index
    %c0_5 = arith.constant 0 : index
    %4 = vector.load %arg2[%c64, %c0_5] : memref<112x96xf32, #tpu.memory_space<vmem>>, vector<48x96xf32>
    %cst_6 = arith.constant dense<0.000000e+00> : vector<8x96xf32>
    %5 = tpu.matmul %1, %4, %cst_6 {dimension_numbers = #tpu.dot_dimension_numbers<[1], [0], [0], [1], [0, 0, 1, 1], [], []>} : vector<8x48xf32>, vector<48x96xf32>, vector<8x96xf32> -> vector<8x96xf32>
    %6 = arith.addf %3, %5 : vector<8x96xf32>
    %c0_7 = arith.constant 0 : index
    %c0_8 = arith.constant 0 : index
    %7 = vector.load %arg6[%c0_7, %c0_8] : memref<13x96xf32, #tpu.memory_space<vmem>>, vector<1x96xf32>
    %8 = vector.broadcast %7 : vector<1x96xf32> to vector<8x96xf32>
    %9 = arith.addf %6, %8 : vector<8x96xf32>
    %cst_9 = arith.constant 0.000000e+00 : f32
    %10 = vector.broadcast %cst_9 : f32 to vector<8x96xf32>
    %11 = arith.maximumf %9, %10 : vector<8x96xf32>
    %c0_10 = arith.constant 0 : index
    %c0_11 = arith.constant 0 : index
    %12 = vector.load %arg3[%c0_10, %c0_11] : memref<96x64xf32, #tpu.memory_space<vmem>>, vector<96x64xf32>
    %cst_12 = arith.constant dense<0.000000e+00> : vector<8x64xf32>
    %13 = tpu.matmul %11, %12, %cst_12 {dimension_numbers = #tpu.dot_dimension_numbers<[1], [0], [0], [1], [0, 0, 1, 1], [], []>} : vector<8x96xf32>, vector<96x64xf32>, vector<8x64xf32> -> vector<8x64xf32>
    %c1 = arith.constant 1 : index
    %c0_13 = arith.constant 0 : index
    %14 = vector.load %arg6[%c1, %c0_13] : memref<13x96xf32, #tpu.memory_space<vmem>>, vector<1x64xf32>
    %15 = vector.broadcast %14 : vector<1x64xf32> to vector<8x64xf32>
    %16 = arith.addf %13, %15 : vector<8x64xf32>
    %cst_14 = arith.constant 0.000000e+00 : f32
    %17 = vector.broadcast %cst_14 : f32 to vector<8x64xf32>
    %18 = arith.maximumf %16, %17 : vector<8x64xf32>
    %c0_15 = arith.constant 0 : index
    %c0_16 = arith.constant 0 : index
    %19 = vector.load %arg4[%c0_15, %c0_16] : memref<64x64xf32, #tpu.memory_space<vmem>>, vector<64x64xf32>
    %cst_17 = arith.constant dense<0.000000e+00> : vector<8x64xf32>
    %20 = tpu.matmul %18, %19, %cst_17 {dimension_numbers = #tpu.dot_dimension_numbers<[1], [0], [0], [1], [0, 0, 1, 1], [], []>} : vector<8x64xf32>, vector<64x64xf32>, vector<8x64xf32> -> vector<8x64xf32>
    %c2 = arith.constant 2 : index
    %c0_18 = arith.constant 0 : index
    %21 = vector.load %arg6[%c2, %c0_18] : memref<13x96xf32, #tpu.memory_space<vmem>>, vector<1x64xf32>
    %22 = vector.broadcast %21 : vector<1x64xf32> to vector<8x64xf32>
    %23 = arith.addf %20, %22 : vector<8x64xf32>
    %24 = vector.extract_strided_slice %23 {offsets = [0, 0], sizes = [8, 32], strides = [1, 1]} : vector<8x64xf32> to vector<8x32xf32>
    %c3 = arith.constant 3 : index
    %c0_19 = arith.constant 0 : index
    %25 = vector.load %arg6[%c3, %c0_19] : memref<13x96xf32, #tpu.memory_space<vmem>>, vector<1x32xf32>
    %c4 = arith.constant 4 : index
    %c0_20 = arith.constant 0 : index
    %26 = vector.load %arg6[%c4, %c0_20] : memref<13x96xf32, #tpu.memory_space<vmem>>, vector<1x32xf32>
    %cst_21 = arith.constant dense<0.000000e+00> : vector<8xf32>
    %27 = vector.multi_reduction <add>, %24, %cst_21 [1] : vector<8x32xf32> to vector<8xf32>
    %28 = vector.shape_cast %27 : vector<8xf32> to vector<8x1xf32>
    %cst_22 = arith.constant 3.200000e+01 : f32
    %29 = vector.broadcast %cst_22 : f32 to vector<8x1xf32>
    %30 = arith.divf %28, %29 : vector<8x1xf32>
    %31 = arith.mulf %24, %24 : vector<8x32xf32>
    %cst_23 = arith.constant dense<0.000000e+00> : vector<8xf32>
    %32 = vector.multi_reduction <add>, %31, %cst_23 [1] : vector<8x32xf32> to vector<8xf32>
    %33 = vector.shape_cast %32 : vector<8xf32> to vector<8x1xf32>
    %cst_24 = arith.constant 3.200000e+01 : f32
    %34 = vector.broadcast %cst_24 : f32 to vector<8x1xf32>
    %35 = arith.divf %33, %34 : vector<8x1xf32>
    %36 = arith.mulf %30, %30 : vector<8x1xf32>
    %37 = arith.subf %35, %36 : vector<8x1xf32>
    %cst_25 = arith.constant 9.99999974E-6 : f32
    %38 = vector.broadcast %cst_25 : f32 to vector<8x1xf32>
    %39 = arith.addf %37, %38 : vector<8x1xf32>
    %40 = math.rsqrt %39 : vector<8x1xf32>
    %41 = vector.broadcast %30 : vector<8x1xf32> to vector<8x32xf32>
    %42 = arith.subf %24, %41 : vector<8x32xf32>
    %43 = vector.broadcast %40 : vector<8x1xf32> to vector<8x32xf32>
    %44 = arith.mulf %42, %43 : vector<8x32xf32>
    %45 = vector.broadcast %25 : vector<1x32xf32> to vector<8x32xf32>
    %46 = arith.mulf %44, %45 : vector<8x32xf32>
    %47 = vector.broadcast %26 : vector<1x32xf32> to vector<8x32xf32>
    %48 = arith.addf %46, %47 : vector<8x32xf32>
    %49 = vector.extract_strided_slice %23 {offsets = [0, 32], sizes = [8, 32], strides = [1, 1]} : vector<8x64xf32> to vector<8x32xf32>
    %c3_26 = arith.constant 3 : index
    %c32 = arith.constant 32 : index
    %50 = vector.load %arg6[%c3_26, %c32] : memref<13x96xf32, #tpu.memory_space<vmem>>, vector<1x32xf32>
    %c4_27 = arith.constant 4 : index
    %c32_28 = arith.constant 32 : index
    %51 = vector.load %arg6[%c4_27, %c32_28] : memref<13x96xf32, #tpu.memory_space<vmem>>, vector<1x32xf32>
    %cst_29 = arith.constant dense<0.000000e+00> : vector<8xf32>
    %52 = vector.multi_reduction <add>, %49, %cst_29 [1] : vector<8x32xf32> to vector<8xf32>
    %53 = vector.shape_cast %52 : vector<8xf32> to vector<8x1xf32>
    %cst_30 = arith.constant 3.200000e+01 : f32
    %54 = vector.broadcast %cst_30 : f32 to vector<8x1xf32>
    %55 = arith.divf %53, %54 : vector<8x1xf32>
    %56 = arith.mulf %49, %49 : vector<8x32xf32>
    %cst_31 = arith.constant dense<0.000000e+00> : vector<8xf32>
    %57 = vector.multi_reduction <add>, %56, %cst_31 [1] : vector<8x32xf32> to vector<8xf32>
    %58 = vector.shape_cast %57 : vector<8xf32> to vector<8x1xf32>
    %cst_32 = arith.constant 3.200000e+01 : f32
    %59 = vector.broadcast %cst_32 : f32 to vector<8x1xf32>
    %60 = arith.divf %58, %59 : vector<8x1xf32>
    %61 = arith.mulf %55, %55 : vector<8x1xf32>
    %62 = arith.subf %60, %61 : vector<8x1xf32>
    %cst_33 = arith.constant 9.99999974E-6 : f32
    %63 = vector.broadcast %cst_33 : f32 to vector<8x1xf32>
    %64 = arith.addf %62, %63 : vector<8x1xf32>
    %65 = math.rsqrt %64 : vector<8x1xf32>
    %66 = vector.broadcast %55 : vector<8x1xf32> to vector<8x32xf32>
    %67 = arith.subf %49, %66 : vector<8x32xf32>
    %68 = vector.broadcast %65 : vector<8x1xf32> to vector<8x32xf32>
    %69 = arith.mulf %67, %68 : vector<8x32xf32>
    %70 = vector.broadcast %50 : vector<1x32xf32> to vector<8x32xf32>
    %71 = arith.mulf %69, %70 : vector<8x32xf32>
    %72 = vector.broadcast %51 : vector<1x32xf32> to vector<8x32xf32>
    %73 = arith.addf %71, %72 : vector<8x32xf32>
    %c5 = arith.constant 5 : index
    %c0_34 = arith.constant 0 : index
    %74 = vector.load %arg6[%c5, %c0_34] : memref<13x96xf32, #tpu.memory_space<vmem>>, vector<1x32xf32>
    %75 = vector.broadcast %74 : vector<1x32xf32> to vector<8x32xf32>
    %76 = arith.mulf %75, %73 : vector<8x32xf32>
    %c0_35 = arith.constant 0 : index
    %c0_36 = arith.constant 0 : index
    %c0_37 = arith.constant 0 : index
    %77 = vector.load %arg5[%c0_35, %c0_36, %c0_37] : memref<8x32x32xf32, #tpu.memory_space<vmem>>, vector<1x32x32xf32>
    %78 = vector.shape_cast %77 : vector<1x32x32xf32> to vector<32x32xf32>
    %cst_38 = arith.constant dense<0.000000e+00> : vector<8x32xf32>
    %79 = tpu.matmul %48, %78, %cst_38 {dimension_numbers = #tpu.dot_dimension_numbers<[1], [0], [0], [1], [0, 0, 1, 1], [], []>} : vector<8x32xf32>, vector<32x32xf32>, vector<8x32xf32> -> vector<8x32xf32>
    %c1_39 = arith.constant 1 : index
    %c0_40 = arith.constant 0 : index
    %c0_41 = arith.constant 0 : index
    %80 = vector.load %arg5[%c1_39, %c0_40, %c0_41] : memref<8x32x32xf32, #tpu.memory_space<vmem>>, vector<1x32x32xf32>
    %81 = vector.shape_cast %80 : vector<1x32x32xf32> to vector<32x32xf32>
    %cst_42 = arith.constant dense<0.000000e+00> : vector<8x32xf32>
    %82 = tpu.matmul %76, %81, %cst_42 {dimension_numbers = #tpu.dot_dimension_numbers<[1], [0], [0], [1], [0, 0, 1, 1], [], []>} : vector<8x32xf32>, vector<32x32xf32>, vector<8x32xf32> -> vector<8x32xf32>
    %83 = arith.addf %79, %82 : vector<8x32xf32>
    %c6 = arith.constant 6 : index
    %c0_43 = arith.constant 0 : index
    %84 = vector.load %arg6[%c6, %c0_43] : memref<13x96xf32, #tpu.memory_space<vmem>>, vector<1x32xf32>
    %85 = vector.broadcast %84 : vector<1x32xf32> to vector<8x32xf32>
    %86 = arith.addf %83, %85 : vector<8x32xf32>
    %cst_44 = arith.constant 0.000000e+00 : f32
    %87 = vector.broadcast %cst_44 : f32 to vector<8x32xf32>
    %88 = arith.maximumf %86, %87 : vector<8x32xf32>
    %c0_45 = arith.constant 0 : index
    %c0_46 = arith.constant 0 : index
    %89 = vector.load %arg7[%c0_45, %c0_46] : memref<8x160xf32, #tpu.memory_space<vmem>>, vector<8x32xf32>
    tpu.vector_store %arg7[%c0_45, %c0_46], %88 {strides = array<i32>} : memref<8x160xf32, #tpu.memory_space<vmem>>, vector<8x32xf32>,
    %c2_47 = arith.constant 2 : index
    %c0_48 = arith.constant 0 : index
    %c0_49 = arith.constant 0 : index
    %90 = vector.load %arg5[%c2_47, %c0_48, %c0_49] : memref<8x32x32xf32, #tpu.memory_space<vmem>>, vector<1x32x32xf32>
    %91 = vector.shape_cast %90 : vector<1x32x32xf32> to vector<32x32xf32>
    %cst_50 = arith.constant dense<0.000000e+00> : vector<8x32xf32>
    %92 = tpu.matmul %88, %91, %cst_50 {dimension_numbers = #tpu.dot_dimension_numbers<[1], [0], [0], [1], [0, 0, 1, 1], [], []>} : vector<8x32xf32>, vector<32x32xf32>, vector<8x32xf32> -> vector<8x32xf32>
    %c7 = arith.constant 7 : index
    %c0_51 = arith.constant 0 : index
    %93 = vector.load %arg6[%c7, %c0_51] : memref<13x96xf32, #tpu.memory_space<vmem>>, vector<1x32xf32>
    %94 = vector.broadcast %93 : vector<1x32xf32> to vector<8x32xf32>
    %95 = arith.addf %92, %94 : vector<8x32xf32>
    %cst_52 = arith.constant 0.000000e+00 : f32
    %96 = vector.broadcast %cst_52 : f32 to vector<8x32xf32>
    %97 = arith.maximumf %95, %96 : vector<8x32xf32>
    %c3_53 = arith.constant 3 : index
    %c0_54 = arith.constant 0 : index
    %c0_55 = arith.constant 0 : index
    %98 = vector.load %arg5[%c3_53, %c0_54, %c0_55] : memref<8x32x32xf32, #tpu.memory_space<vmem>>, vector<1x32x32xf32>
    %99 = vector.shape_cast %98 : vector<1x32x32xf32> to vector<32x32xf32>
    %cst_56 = arith.constant dense<0.000000e+00> : vector<8x32xf32>
    %100 = tpu.matmul %97, %99, %cst_56 {dimension_numbers = #tpu.dot_dimension_numbers<[1], [0], [0], [1], [0, 0, 1, 1], [], []>} : vector<8x32xf32>, vector<32x32xf32>, vector<8x32xf32> -> vector<8x32xf32>
    %c10 = arith.constant 10 : index
    %c0_57 = arith.constant 0 : index
    %101 = vector.load %arg6[%c10, %c0_57] : memref<13x96xf32, #tpu.memory_space<vmem>>, vector<1x32xf32>
    %102 = vector.broadcast %101 : vector<1x32xf32> to vector<8x32xf32>
    %103 = arith.addf %100, %102 : vector<8x32xf32>
    %cst_58 = arith.constant 0.000000e+00 : f32
    %104 = vector.broadcast %cst_58 : f32 to vector<8x32xf32>
    %105 = arith.maximumf %103, %104 : vector<8x32xf32>
    %c0_59 = arith.constant 0 : index
    %c32_60 = arith.constant 32 : index
    %106 = vector.load %arg7[%c0_59, %c32_60] : memref<8x160xf32, #tpu.memory_space<vmem>>, vector<8x32xf32>
    tpu.vector_store %arg7[%c0_59, %c32_60], %105 {strides = array<i32>} : memref<8x160xf32, #tpu.memory_space<vmem>>, vector<8x32xf32>,
    %c4_61 = arith.constant 4 : index
    %c0_62 = arith.constant 0 : index
    %c0_63 = arith.constant 0 : index
    %107 = vector.load %arg5[%c4_61, %c0_62, %c0_63] : memref<8x32x32xf32, #tpu.memory_space<vmem>>, vector<1x32x32xf32>
    %108 = vector.shape_cast %107 : vector<1x32x32xf32> to vector<32x32xf32>
    %cst_64 = arith.constant dense<0.000000e+00> : vector<8x32xf32>
    %109 = tpu.matmul %105, %108, %cst_64 {dimension_numbers = #tpu.dot_dimension_numbers<[1], [0], [0], [1], [0, 0, 1, 1], [], []>} : vector<8x32xf32>, vector<32x32xf32>, vector<8x32xf32> -> vector<8x32xf32>
    %c8 = arith.constant 8 : index
    %c0_65 = arith.constant 0 : index
    %110 = vector.load %arg6[%c8, %c0_65] : memref<13x96xf32, #tpu.memory_space<vmem>>, vector<1x32xf32>
    %111 = vector.broadcast %110 : vector<1x32xf32> to vector<8x32xf32>
    %112 = arith.addf %109, %111 : vector<8x32xf32>
    %cst_66 = arith.constant 0.000000e+00 : f32
    %113 = vector.broadcast %cst_66 : f32 to vector<8x32xf32>
    %114 = arith.maximumf %112, %113 : vector<8x32xf32>
    %c5_67 = arith.constant 5 : index
    %c0_68 = arith.constant 0 : index
    %c0_69 = arith.constant 0 : index
    %115 = vector.load %arg5[%c5_67, %c0_68, %c0_69] : memref<8x32x32xf32, #tpu.memory_space<vmem>>, vector<1x32x32xf32>
    %116 = vector.shape_cast %115 : vector<1x32x32xf32> to vector<32x32xf32>
    %cst_70 = arith.constant dense<0.000000e+00> : vector<8x32xf32>
    %117 = tpu.matmul %114, %116, %cst_70 {dimension_numbers = #tpu.dot_dimension_numbers<[1], [0], [0], [1], [0, 0, 1, 1], [], []>} : vector<8x32xf32>, vector<32x32xf32>, vector<8x32xf32> -> vector<8x32xf32>
    %c11 = arith.constant 11 : index
    %c0_71 = arith.constant 0 : index
    %118 = vector.load %arg6[%c11, %c0_71] : memref<13x96xf32, #tpu.memory_space<vmem>>, vector<1x32xf32>
    %119 = vector.broadcast %118 : vector<1x32xf32> to vector<8x32xf32>
    %120 = arith.addf %117, %119 : vector<8x32xf32>
    %cst_72 = arith.constant 0.000000e+00 : f32
    %121 = vector.broadcast %cst_72 : f32 to vector<8x32xf32>
    %122 = arith.maximumf %120, %121 : vector<8x32xf32>
    %c0_73 = arith.constant 0 : index
    %c64_74 = arith.constant 64 : index
    %123 = vector.load %arg7[%c0_73, %c64_74] : memref<8x160xf32, #tpu.memory_space<vmem>>, vector<8x32xf32>
    tpu.vector_store %arg7[%c0_73, %c64_74], %122 {strides = array<i32>} : memref<8x160xf32, #tpu.memory_space<vmem>>, vector<8x32xf32>,
    %c6_75 = arith.constant 6 : index
    %c0_76 = arith.constant 0 : index
    %c0_77 = arith.constant 0 : index
    %124 = vector.load %arg5[%c6_75, %c0_76, %c0_77] : memref<8x32x32xf32, #tpu.memory_space<vmem>>, vector<1x32x32xf32>
    %125 = vector.shape_cast %124 : vector<1x32x32xf32> to vector<32x32xf32>
    %cst_78 = arith.constant dense<0.000000e+00> : vector<8x32xf32>
    %126 = tpu.matmul %122, %125, %cst_78 {dimension_numbers = #tpu.dot_dimension_numbers<[1], [0], [0], [1], [0, 0, 1, 1], [], []>} : vector<8x32xf32>, vector<32x32xf32>, vector<8x32xf32> -> vector<8x32xf32>
    %c9 = arith.constant 9 : index
    %c0_79 = arith.constant 0 : index
    %127 = vector.load %arg6[%c9, %c0_79] : memref<13x96xf32, #tpu.memory_space<vmem>>, vector<1x32xf32>
    %128 = vector.broadcast %127 : vector<1x32xf32> to vector<8x32xf32>
    %129 = arith.addf %126, %128 : vector<8x32xf32>
    %cst_80 = arith.constant 0.000000e+00 : f32
    %130 = vector.broadcast %cst_80 : f32 to vector<8x32xf32>
    %131 = arith.maximumf %129, %130 : vector<8x32xf32>
    %c7_81 = arith.constant 7 : index
    %c0_82 = arith.constant 0 : index
    %c0_83 = arith.constant 0 : index
    %132 = vector.load %arg5[%c7_81, %c0_82, %c0_83] : memref<8x32x32xf32, #tpu.memory_space<vmem>>, vector<1x32x32xf32>
    %133 = vector.shape_cast %132 : vector<1x32x32xf32> to vector<32x32xf32>
    %cst_84 = arith.constant dense<0.000000e+00> : vector<8x32xf32>
    %134 = tpu.matmul %131, %133, %cst_84 {dimension_numbers = #tpu.dot_dimension_numbers<[1], [0], [0], [1], [0, 0, 1, 1], [], []>} : vector<8x32xf32>, vector<32x32xf32>, vector<8x32xf32> -> vector<8x32xf32>
    %c12 = arith.constant 12 : index
    %c0_85 = arith.constant 0 : index
    %135 = vector.load %arg6[%c12, %c0_85] : memref<13x96xf32, #tpu.memory_space<vmem>>, vector<1x32xf32>
    %136 = vector.broadcast %135 : vector<1x32xf32> to vector<8x32xf32>
    %137 = arith.addf %134, %136 : vector<8x32xf32>
    %cst_86 = arith.constant 0.000000e+00 : f32
    %138 = vector.broadcast %cst_86 : f32 to vector<8x32xf32>
    %139 = arith.maximumf %137, %138 : vector<8x32xf32>
    %c0_87 = arith.constant 0 : index
    %c96 = arith.constant 96 : index
    %140 = vector.load %arg7[%c0_87, %c96] : memref<8x160xf32, #tpu.memory_space<vmem>>, vector<8x32xf32>
    tpu.vector_store %arg7[%c0_87, %c96], %139 {strides = array<i32>} : memref<8x160xf32, #tpu.memory_space<vmem>>, vector<8x32xf32>,
    %c0_88 = arith.constant 0 : index
    %c128 = arith.constant 128 : index
    %141 = vector.load %arg7[%c0_88, %c128] : memref<8x160xf32, #tpu.memory_space<vmem>>, vector<8x32xf32>
    tpu.vector_store %arg7[%c0_88, %c128], %73 {strides = array<i32>} : memref<8x160xf32, #tpu.memory_space<vmem>>, vector<8x32xf32>,
    return
  }
}

</mosaic_0001>

<llo_original>
// kernel: tpu_custom_call.1
$region0: #{tpu_custom_call.1}
  #allocation0 [shape = 'u32[]', space=smem, size = 0x4, offset = 0x4, fixed_abs, tag = 'smem constant byte address 0x4 - core index']
  #allocation1 [shape = 'u32[72,128]{1,0:T(1,128)}', space=vmem, size = 0x9000, scoped, tag = 'internal scratch']
  %s0 = inlined_call_operand.vmem [shape: f32[8,64], index: 0, kind: input, shape index: {}]
  %s1 = inlined_call_operand.vmem [shape: f32[8,48], index: 1, kind: input, shape index: {}]
  %s2 = inlined_call_operand.vmem [shape: f32[112,96], index: 2, kind: input, shape index: {}]
  %s3 = inlined_call_operand.vmem [shape: f32[96,64], index: 3, kind: input, shape index: {}]
  %s4 = inlined_call_operand.vmem [shape: f32[64,64], index: 4, kind: input, shape index: {}]
  %s5 = inlined_call_operand.vmem [shape: f32[8,32,32], index: 5, kind: input, shape index: {}]
  %s6 = inlined_call_operand.vmem [shape: f32[13,96], index: 6, kind: input, shape index: {}]
  %s7 = inlined_call_operand.hbm [shape: f32[8,160], index: 7, kind: output, shape index: {}]
  %s8 = sld [smem:[#allocation0]]
  $region38: #{tpu_custom_call.1} parent=0
    _
  %s10 = ssub.s32 1, %s8
  %s11 = scalar_select 0, %s10, %s8
  $region1: #{tpu_custom_call.1} parent=0
    #allocation2 [shape = 'u8[8192]{0}', space=vmem, size = 0x2000, scoped, tag = 'output window, operand 0, single buffered']
    #allocation3 [shape = 's32[1]{0}', space=sflag, size = 0x4, scoped, tag = 'scoped memory for tpu_custom_call.1']
    %12 = vsyncpa [#allocation3], 0
    // Predicated region
    $region2: #{tpu_custom_call.1} parent=1 // pred_check
      _
    $region3: #{tpu_custom_call.1} parent=1 // pred_check_branch
      %14 = sbr.rel (0) target = $region5
    $region4: #{tpu_custom_call.1} parent=1 // pred_region
      _
    $region5: #{tpu_custom_call.1} parent=1 // pred_fallthru
      _
    // Predicated region
    $region6: #{tpu_custom_call.1} parent=1 // pred_check
      _
    $region7: #{tpu_custom_call.1} parent=1 // pred_check_branch
      %16 = sbr.rel (0) target = $region9
    $region8: #{tpu_custom_call.1} parent=1 // pred_region
      _
    $region9: #{tpu_custom_call.1} parent=1 // pred_fallthru
      _
    // Predicated region
    $region10: #{tpu_custom_call.1} parent=1 // pred_check
      _
    $region11: #{tpu_custom_call.1} parent=1 // pred_check_branch
      %18 = sbr.rel (0) target = $region13
    $region12: #{tpu_custom_call.1} parent=1 // pred_region
      _
    $region13: #{tpu_custom_call.1} parent=1 // pred_fallthru
      _
    // Predicated region
    $region14: #{tpu_custom_call.1} parent=1 // pred_check
      _
    $region15: #{tpu_custom_call.1} parent=1 // pred_check_branch
      %20 = sbr.rel (0) target = $region17
    $region16: #{tpu_custom_call.1} parent=1 // pred_region
      _
    $region17: #{tpu_custom_call.1} parent=1 // pred_fallthru
      _
    // Predicated region
    $region18: #{tpu_custom_call.1} parent=1 // pred_check
      _
    $region19: #{tpu_custom_call.1} parent=1 // pred_check_branch
      %22 = sbr.rel (0) target = $region21
    $region20: #{tpu_custom_call.1} parent=1 // pred_region
      _
    $region21: #{tpu_custom_call.1} parent=1 // pred_fallthru
      _
    // Predicated region
    $region22: #{tpu_custom_call.1} parent=1 // pred_check
      _
    $region23: #{tpu_custom_call.1} parent=1 // pred_check_branch
      %24 = sbr.rel (0) target = $region25
    $region24: #{tpu_custom_call.1} parent=1 // pred_region
      _
    $region25: #{tpu_custom_call.1} parent=1 // pred_fallthru
      _
    // Predicated region
    $region26: #{tpu_custom_call.1} parent=1 // pred_check
      _
    $region27: #{tpu_custom_call.1} parent=1 // pred_check_branch
      %26 = sbr.rel (0) target = $region29
    $region28: #{tpu_custom_call.1} parent=1 // pred_region
      _
    $region29: #{tpu_custom_call.1} parent=1 // pred_fallthru
      _
    %v27 = vld [vmem:[%s0] sm:$0xff]
    %v28 = vld [vmem:[%s1] sm:$0xff]
    %v29 = vld [vmem:[%s2] sm:$0xff]
    %v30 = vld [vmem:[%s2 + $0x8] sm:$0xff]
    %v31 = vld [vmem:[%s2 + $0x10] sm:$0xff]
    %v32 = vld [vmem:[%s2 + $0x18] sm:$0xff]
    %v33 = vld [vmem:[%s2 + $0x20] sm:$0xff]
    %v34 = vld [vmem:[%s2 + $0x28] sm:$0xff]
    %v35 = vld [vmem:[%s2 + $0x30] sm:$0xff]
    %v36 = vld [vmem:[%s2 + $0x38] sm:$0xff]
    %v37 = vld [vmem:[%s2 + $0x40] sm:$0xff]
    %v38 = vld [vmem:[%s2 + $0x48] sm:$0xff]
    %v39 = vld [vmem:[%s2 + $0x50] sm:$0xff]
    %v40 = vld [vmem:[%s2 + $0x58] sm:$0xff]
    %v41 = vld [vmem:[%s2 + $0x60] sm:$0xff]
    %v42 = vld [vmem:[%s2 + $0x68] sm:$0xff]
    %vm43 = vcmask 392192
    %v45 = vsel %vm43, %v28, 0
    %47 = vmatpush.msra.mxu0 0.0
    %48 = vmatpush.msra.mxu0 0.0
    %49 = vmatpush.msra.mxu0 0.0
    %50 = vmatpush.msra.mxu0 0.0
    %51 = vmatpush.msra.mxu0 0.0
    %52 = vmatpush.msra.mxu0 0.0
    %53 = vmatpush.msra.mxu0 0.0
    %54 = vmatpush.msra.mxu0 0.0
    %55 = vmatpush.msra.mxu0 0.0
    %56 = vmatpush.msra.mxu0 0.0
    %57 = vmatpush.msra.mxu0 %v42
    %58 = vmatpush.msra.mxu0 %v41
    %59 = vmatpush.msra.mxu0 %v40
    %60 = vmatpush.msra.mxu0 %v39
    %61 = vmatpush.msra.mxu0 %v38
    %62 = vmatpush.msra.mxu0 %v37
    %63 = vmatmul.f32.gmra.mxu0 %v45
    %v64 = vpop.f32.mrf.mxu0
    %v65 = vadd.f32 0.0, %v64
    %66 = vdwg.mxu0
    %vm67 = vcmask 523264
    %v69 = vsel %vm67, %v27, 0
    %71 = vmatpush.msra.mxu0 0.0
    %72 = vmatpush.msra.mxu0 0.0
    %73 = vmatpush.msra.mxu0 0.0
    %74 = vmatpush.msra.mxu0 0.0
    %75 = vmatpush.msra.mxu0 0.0
    %76 = vmatpush.msra.mxu0 0.0
    %77 = vmatpush.msra.mxu0 0.0
    %78 = vmatpush.msra.mxu0 0.0
    %79 = vmatpush.msra.mxu0 %v36
    %80 = vmatpush.msra.mxu0 %v35
    %81 = vmatpush.msra.mxu0 %v34
    %82 = vmatpush.msra.mxu0 %v33
    %83 = vmatpush.msra.mxu0 %v32
    %84 = vmatpush.msra.mxu0 %v31
    %85 = vmatpush.msra.mxu0 %v30
    %86 = vmatpush.msra.mxu0 %v29
    %87 = vmatmul.f32.gmra.mxu0 %v69
    %v88 = vpop.f32.mrf.mxu0
    %v89 = vadd.f32 %v65, %v88
    %90 = vdwg.mxu0
    %v91 = vld [vmem:[%s6] sm:$0x1]
    %v92 = vperm.slane %v91, 0
    %v93 = vadd.f32 %v89, %v92
    %v94 = vmax.f32 %v93, 0.0
    %v95 = vld [vmem:[%s3] sm:$0xff]
    %v96 = vld [vmem:[%s3 + $0x8] sm:$0xff]
    %v97 = vld [vmem:[%s3 + $0x10] sm:$0xff]
    %v98 = vld [vmem:[%s3 + $0x18] sm:$0xff]
    %v99 = vld [vmem:[%s3 + $0x20] sm:$0xff]
    %v100 = vld [vmem:[%s3 + $0x28] sm:$0xff]
    %v101 = vld [vmem:[%s3 + $0x30] sm:$0xff]
    %v102 = vld [vmem:[%s3 + $0x38] sm:$0xff]
    %v103 = vld [vmem:[%s3 + $0x40] sm:$0xff]
    %v104 = vld [vmem:[%s3 + $0x48] sm:$0xff]
    %v105 = vld [vmem:[%s3 + $0x50] sm:$0xff]
    %v106 = vld [vmem:[%s3 + $0x58] sm:$0xff]
    %v107 = vld [vmem:[%s6 + $0x1] sm:$0x1]
    %v108 = vperm.slane %v107, 0
    %vm109 = vcmask 785408
    %v111 = vsel %vm109, %v94, 0
    %113 = vmatpush.msra.mxu0 0.0
    %114 = vmatpush.msra.mxu0 0.0
    %115 = vmatpush.msra.mxu0 0.0
    %116 = vmatpush.msra.mxu0 0.0
    %117 = vmatpush.msra.mxu0 %v106
    %118 = vmatpush.msra.mxu0 %v105
    %119 = vmatpush.msra.mxu0 %v104
    %120 = vmatpush.msra.mxu0 %v103
    %121 = vmatpush.msra.mxu0 %v102
    %122 = vmatpush.msra.mxu0 %v101
    %123 = vmatpush.msra.mxu0 %v100
    %124 = vmatpush.msra.mxu0 %v99
    %125 = vmatpush.msra.mxu0 %v98
    %126 = vmatpush.msra.mxu0 %v97
    %127 = vmatpush.msra.mxu0 %v96
    %128 = vmatpush.msra.mxu0 %v95
    %129 = vmatmul.f32.gmra.mxu0 %v111
    %v130 = vpop.f32.mrf.mxu0
    %v131 = vadd.f32 %v108, %v130
    %132 = vdwg.mxu0
    %v133 = vmax.f32 %v131, 0.0
    %v134 = vld [vmem:[%s4] sm:$0xff]
    %v135 = vld [vmem:[%s4 + $0x8] sm:$0xff]
    %v136 = vld [vmem:[%s4 + $0x10] sm:$0xff]
    %v137 = vld [vmem:[%s4 + $0x18] sm:$0xff]
    %v138 = vld [vmem:[%s4 + $0x20] sm:$0xff]
    %v139 = vld [vmem:[%s4 + $0x28] sm:$0xff]
    %v140 = vld [vmem:[%s4 + $0x30] sm:$0xff]
    %v141 = vld [vmem:[%s4 + $0x38] sm:$0xff]
    %v142 = vld [vmem:[%s6 + $0x2] sm:$0x1]
    %v143 = vperm.slane %v142, 0
    %v145 = vsel %vm67, %v133, 0
    %147 = vmatpush.msra.mxu0 0.0
    %148 = vmatpush.msra.mxu0 0.0
    %149 = vmatpush.msra.mxu0 0.0
    %150 = vmatpush.msra.mxu0 0.0
    %151 = vmatpush.msra.mxu0 0.0
    %152 = vmatpush.msra.mxu0 0.0
    %153 = vmatpush.msra.mxu0 0.0
    %154 = vmatpush.msra.mxu0 0.0
    %155 = vmatpush.msra.mxu0 %v141
    %156 = vmatpush.msra.mxu0 %v140
    %157 = vmatpush.msra.mxu0 %v139
    %158 = vmatpush.msra.mxu0 %v138
    %159 = vmatpush.msra.mxu0 %v137
    %160 = vmatpush.msra.mxu0 %v136
    %161 = vmatpush.msra.mxu0 %v135
    %162 = vmatpush.msra.mxu0 %v134
    %163 = vmatmul.f32.gmra.mxu0 %v145
    %v164 = vpop.f32.mrf.mxu0
    %v165 = vadd.f32 %v143, %v164
    %166 = vdwg.mxu0
    %v167 = vld [vmem:[%s6 + $0x3] sm:$0x1]
    %v168 = vld [vmem:[%s6 + $0x4] sm:$0x1]
    %vm169 = vcmask 261120
    %v170 = vsel %vm169, %v165, 0.0
    %171 = vadd.xlane.f32.xlu0 %v170
    %v172 = vpop.xlane.xlu0 %171
    %v173 = vrcp.pop 32.0
    %v174 = vmul.f32 32.0, %v173
    %v175 = vsub.f32 1.0, %v174
    %v176 = vmul.f32 %v173, %v175
    %v177 = vadd.f32 %v173, %v176
    %vm178 = vweird.f32 %v173
    %v179 = vsel %vm178, %v173, %v177
    %v180 = vmul.f32 %v172, %v179
    %v181 = vmul.f32 %v165, %v165
    %v182 = vsel %vm169, %v181, 0.0
    %183 = vadd.xlane.f32.xlu0 %v182
    %v184 = vpop.xlane.xlu0 %183
    %v185 = vmul.f32 %v184, %v179
    %v186 = vmul.f32 %v180, %v180
    %v187 = vsub.f32 %v185, %v186
    %v188 = vadd.f32 %v187, 1e-05
    %v189 = vrsqrt.pop %v188
    %v190 = vmul.f32 %v189, %v188
    %v191 = vmul.f32 %v190, %v189
    %v192 = vmul.f32 0.5, %v191
    %v193 = vsub.f32 1.5, %v192
    %v194 = vmul.f32 %v189, %v193
    %vm195 = vweird.f32 %v188
    %vm196 = vweird.f32 %v189
    %vm197 = vmor %vm195, %vm196
    %v198 = vsel %vm197, %v189, %v194
    %v199 = vsub.f32 %v165, %v180
    %v200 = vmul.f32 %v199, %v198
    %v201 = vperm.slane %v167, 0
    %v202 = vmul.f32 %v200, %v201
    %v203 = vperm.slane %v168, 0
    %v204 = vadd.f32 %v202, %v203
    %206 = vrot.lane.b32.xlu0 %v165, 96
    %v207 = vpop.permute.xlu0 %206
    %v209 = vsel %vm169, %v207, 0.0
    %210 = vadd.xlane.f32.xlu0 %v209
    %v211 = vpop.xlane.xlu0 %210
    %v212 = vmul.f32 %v211, %v179
    %214 = vrot.lane.b32.xlu0 %v181, 96
    %v215 = vpop.permute.xlu0 %214
    %v217 = vsel %vm169, %v215, 0.0
    %218 = vadd.xlane.f32.xlu0 %v217
    %v219 = vpop.xlane.xlu0 %218
    %v220 = vmul.f32 %v219, %v179
    %v221 = vmul.f32 %v212, %v212
    %v222 = vsub.f32 %v220, %v221
    %v223 = vadd.f32 %v222, 1e-05
    %v224 = vrsqrt.pop %v223
    %v225 = vmul.f32 %v224, %v223
    %v226 = vmul.f32 %v225, %v224
    %v227 = vmul.f32 0.5, %v226
    %v228 = vsub.f32 1.5, %v227
    %v229 = vmul.f32 %v224, %v228
    %vm230 = vweird.f32 %v223
    %vm231 = vweird.f32 %v224
    %vm232 = vmor %vm230, %vm231
    %v233 = vsel %vm232, %v224, %v229
    %v234 = vsub.f32 %v165, %v212
    %v235 = vmul.f32 %v234, %v233
    %v236 = vmul.f32 %v235, %v201
    %v237 = vadd.f32 %v236, %v203
    %v238 = vld [vmem:[%s6 + $0x5] sm:$0x1]
    %v239 = vperm.slane %v238, 0
    %241 = vrot.lane.b32.xlu0 %v237, 96
    %v242 = vpop.permute.xlu0 %241
    %v244 = vmul.f32 %v239, %v242
    %v245 = vld [vmem:[%s5] sm:$0xff]
    %v246 = vld [vmem:[%s5 + $0x8] sm:$0xff]
    %v247 = vld [vmem:[%s5 + $0x10] sm:$0xff]
    %v248 = vld [vmem:[%s5 + $0x18] sm:$0xff]
    %s249 = scalar_lea.vmem %s5, 32
    %v250 = vld [vmem:[%s249] sm:$0xff]
    %v251 = vld [vmem:[%s249 + $0x8] sm:$0xff]
    %v252 = vld [vmem:[%s249 + $0x10] sm:$0xff]
    %v253 = vld [vmem:[%s249 + $0x18] sm:$0xff]
    %v255 = vsel %vm169, %v244, 0
    %257 = vmatpush.msra.mxu0 0.0
    %258 = vmatpush.msra.mxu0 0.0
    %259 = vmatpush.msra.mxu0 0.0
    %260 = vmatpush.msra.mxu0 0.0
    %261 = vmatpush.msra.mxu0 0.0
    %262 = vmatpush.msra.mxu0 0.0
    %263 = vmatpush.msra.mxu0 0.0
    %264 = vmatpush.msra.mxu0 0.0
    %265 = vmatpush.msra.mxu0 0.0
    %266 = vmatpush.msra.mxu0 0.0
    %267 = vmatpush.msra.mxu0 0.0
    %268 = vmatpush.msra.mxu0 0.0
    %269 = vmatpush.msra.mxu0 %v253
    %270 = vmatpush.msra.mxu0 %v252
    %271 = vmatpush.msra.mxu0 %v251
    %272 = vmatpush.msra.mxu0 %v250
    %273 = vmatmul.f32.gmra.mxu0 %v255
    %v274 = vpop.f32.mrf.mxu0
    %v275 = vadd.f32 0.0, %v274
    %276 = vdwg.mxu0
    %v278 = vsel %vm169, %v204, 0
    %280 = vmatpush.msra.mxu0 0.0
    %281 = vmatpush.msra.mxu0 0.0
    %282 = vmatpush.msra.mxu0 0.0
    %283 = vmatpush.msra.mxu0 0.0
    %284 = vmatpush.msra.mxu0 0.0
    %285 = vmatpush.msra.mxu0 0.0
    %286 = vmatpush.msra.mxu0 0.0
    %287 = vmatpush.msra.mxu0 0.0
    %288 = vmatpush.msra.mxu0 0.0
    %289 = vmatpush.msra.mxu0 0.0
    %290 = vmatpush.msra.mxu0 0.0
    %291 = vmatpush.msra.mxu0 0.0
    %292 = vmatpush.msra.mxu0 %v248
    %293 = vmatpush.msra.mxu0 %v247
    %294 = vmatpush.msra.mxu0 %v246
    %295 = vmatpush.msra.mxu0 %v245
    %296 = vmatmul.f32.gmra.mxu0 %v278
    %v297 = vpop.f32.mrf.mxu0
    %v298 = vadd.f32 %v275, %v297
    %299 = vdwg.mxu0
    %v300 = vld [vmem:[%s6 + $0x6] sm:$0x1]
    %v301 = vperm.slane %v300, 0
    %v302 = vadd.f32 %v298, %v301
    %v303 = vmax.f32 %v302, 0.0
    %304 = vst.msk [vmem:[#allocation2] sm:$0xff] %vm169, %v303
    %s305 = scalar_lea.vmem %s5, 64
    %v306 = vld [vmem:[%s305] sm:$0xff]
    %v307 = vld [vmem:[%s305 + $0x8] sm:$0xff]
    %v308 = vld [vmem:[%s305 + $0x10] sm:$0xff]
    %v309 = vld [vmem:[%s305 + $0x18] sm:$0xff]
    %v310 = vld [vmem:[%s6 + $0x7] sm:$0x1]
    %v311 = vperm.slane %v310, 0
    %v313 = vsel %vm169, %v303, 0
    %315 = vmatpush.msra.mxu0 0.0
    %316 = vmatpush.msra.mxu0 0.0
    %317 = vmatpush.msra.mxu0 0.0
    %318 = vmatpush.msra.mxu0 0.0
    %319 = vmatpush.msra.mxu0 0.0
    %320 = vmatpush.msra.mxu0 0.0
    %321 = vmatpush.msra.mxu0 0.0
    %322 = vmatpush.msra.mxu0 0.0
    %323 = vmatpush.msra.mxu0 0.0
    %324 = vmatpush.msra.mxu0 0.0
    %325 = vmatpush.msra.mxu0 0.0
    %326 = vmatpush.msra.mxu0 0.0
    %327 = vmatpush.msra.mxu0 %v309
    %328 = vmatpush.msra.mxu0 %v308
    %329 = vmatpush.msra.mxu0 %v307
    %330 = vmatpush.msra.mxu0 %v306
    %331 = vmatmul.f32.gmra.mxu0 %v313
    %v332 = vpop.f32.mrf.mxu0
    %v333 = vadd.f32 %v311, %v332
    %334 = vdwg.mxu0
    %v335 = vmax.f32 %v333, 0.0
    %s336 = scalar_lea.vmem %s5, 96
    %v337 = vld [vmem:[%s336] sm:$0xff]
    %v338 = vld [vmem:[%s336 + $0x8] sm:$0xff]
    %v339 = vld [vmem:[%s336 + $0x10] sm:$0xff]
    %v340 = vld [vmem:[%s336 + $0x18] sm:$0xff]
    %v341 = vld [vmem:[%s6 + $0xa] sm:$0x1]
    %v342 = vperm.slane %v341, 0
    %v344 = vsel %vm169, %v335, 0
    %346 = vmatpush.msra.mxu0 0.0
    %347 = vmatpush.msra.mxu0 0.0
    %348 = vmatpush.msra.mxu0 0.0
    %349 = vmatpush.msra.mxu0 0.0
    %350 = vmatpush.msra.mxu0 0.0
    %351 = vmatpush.msra.mxu0 0.0
    %352 = vmatpush.msra.mxu0 0.0
    %353 = vmatpush.msra.mxu0 0.0
    %354 = vmatpush.msra.mxu0 0.0
    %355 = vmatpush.msra.mxu0 0.0
    %356 = vmatpush.msra.mxu0 0.0
    %357 = vmatpush.msra.mxu0 0.0
    %358 = vmatpush.msra.mxu0 %v340
    %359 = vmatpush.msra.mxu0 %v339
    %360 = vmatpush.msra.mxu0 %v338
    %361 = vmatpush.msra.mxu0 %v337
    %362 = vmatmul.f32.gmra.mxu0 %v344
    %v363 = vpop.f32.mrf.mxu0
    %v364 = vadd.f32 %v342, %v363
    %365 = vdwg.mxu0
    %v366 = vmax.f32 %v364, 0.0
    %368 = vrot.lane.b32.xlu0 %v366, 32
    %v369 = vpop.permute.xlu0 %368
    %vm371 = vcmask 523520
    %372 = vst.msk [vmem:[#allocation2] sm:$0xff] %vm371, %v369
    %s373 = scalar_lea.vmem %s5, 128
    %v374 = vld [vmem:[%s373] sm:$0xff]
    %v375 = vld [vmem:[%s373 + $0x8] sm:$0xff]
    %v376 = vld [vmem:[%s373 + $0x10] sm:$0xff]
    %v377 = vld [vmem:[%s373 + $0x18] sm:$0xff]
    %v378 = vld [vmem:[%s6 + $0x8] sm:$0x1]
    %v379 = vperm.slane %v378, 0
    %v380 = vsel %vm169, %v366, 0
    %382 = vmatpush.msra.mxu0 0.0
    %383 = vmatpush.msra.mxu0 0.0
    %384 = vmatpush.msra.mxu0 0.0
    %385 = vmatpush.msra.mxu0 0.0
    %386 = vmatpush.msra.mxu0 0.0
    %387 = vmatpush.msra.mxu0 0.0
    %388 = vmatpush.msra.mxu0 0.0
    %389 = vmatpush.msra.mxu0 0.0
    %390 = vmatpush.msra.mxu0 0.0
    %391 = vmatpush.msra.mxu0 0.0
    %392 = vmatpush.msra.mxu0 0.0
    %393 = vmatpush.msra.mxu0 0.0
    %394 = vmatpush.msra.mxu0 %v377
    %395 = vmatpush.msra.mxu0 %v376
    %396 = vmatpush.msra.mxu0 %v375
    %397 = vmatpush.msra.mxu0 %v374
    %398 = vmatmul.f32.gmra.mxu0 %v380
    %v399 = vpop.f32.mrf.mxu0
    %v400 = vadd.f32 %v379, %v399
    %401 = vdwg.mxu0
    %v402 = vmax.f32 %v400, 0.0
    %s403 = scalar_lea.vmem %s5, 160
    %v404 = vld [vmem:[%s403] sm:$0xff]
    %v405 = vld [vmem:[%s403 + $0x8] sm:$0xff]
    %v406 = vld [vmem:[%s403 + $0x10] sm:$0xff]
    %v407 = vld [vmem:[%s403 + $0x18] sm:$0xff]
    %v408 = vld [vmem:[%s6 + $0xb] sm:$0x1]
    %v409 = vperm.slane %v408, 0
    %v411 = vsel %vm169, %v402, 0
    %413 = vmatpush.msra.mxu0 0.0
    %414 = vmatpush.msra.mxu0 0.0
    %415 = vmatpush.msra.mxu0 0.0
    %416 = vmatpush.msra.mxu0 0.0
    %417 = vmatpush.msra.mxu0 0.0
    %418 = vmatpush.msra.mxu0 0.0
    %419 = vmatpush.msra.mxu0 0.0
    %420 = vmatpush.msra.mxu0 0.0
    %421 = vmatpush.msra.mxu0 0.0
    %422 = vmatpush.msra.mxu0 0.0
    %423 = vmatpush.msra.mxu0 0.0
    %424 = vmatpush.msra.mxu0 0.0
    %425 = vmatpush.msra.mxu0 %v407
    %426 = vmatpush.msra.mxu0 %v406
    %427 = vmatpush.msra.mxu0 %v405
    %428 = vmatpush.msra.mxu0 %v404
    %429 = vmatmul.f32.gmra.mxu0 %v411
    %v430 = vpop.f32.mrf.mxu0
    %v431 = vadd.f32 %v409, %v430
    %432 = vdwg.mxu0
    %v433 = vmax.f32 %v431, 0.0
    %435 = vrot.lane.b32.xlu0 %v433, 64
    %v436 = vpop.permute.xlu0 %435
    %vm438 = vcmask 785920
    %439 = vst.msk [vmem:[#allocation2] sm:$0xff] %vm438, %v436
    %s440 = scalar_lea.vmem %s5, 192
    %v441 = vld [vmem:[%s440] sm:$0xff]
    %v442 = vld [vmem:[%s440 + $0x8] sm:$0xff]
    %v443 = vld [vmem:[%s440 + $0x10] sm:$0xff]
    %v444 = vld [vmem:[%s440 + $0x18] sm:$0xff]
    %v445 = vld [vmem:[%s6 + $0x9] sm:$0x1]
    %v446 = vperm.slane %v445, 0
    %v447 = vsel %vm169, %v433, 0
    %449 = vmatpush.msra.mxu0 0.0
    %450 = vmatpush.msra.mxu0 0.0
    %451 = vmatpush.msra.mxu0 0.0
    %452 = vmatpush.msra.mxu0 0.0
    %453 = vmatpush.msra.mxu0 0.0
    %454 = vmatpush.msra.mxu0 0.0
    %455 = vmatpush.msra.mxu0 0.0
    %456 = vmatpush.msra.mxu0 0.0
    %457 = vmatpush.msra.mxu0 0.0
    %458 = vmatpush.msra.mxu0 0.0
    %459 = vmatpush.msra.mxu0 0.0
    %460 = vmatpush.msra.mxu0 0.0
    %461 = vmatpush.msra.mxu0 %v444
    %462 = vmatpush.msra.mxu0 %v443
    %463 = vmatpush.msra.mxu0 %v442
    %464 = vmatpush.msra.mxu0 %v441
    %465 = vmatmul.f32.gmra.mxu0 %v447
    %v466 = vpop.f32.mrf.mxu0
    %v467 = vadd.f32 %v446, %v466
    %468 = vdwg.mxu0
    %v469 = vmax.f32 %v467, 0.0
    %s470 = scalar_lea.vmem %s5, 224
    %v471 = vld [vmem:[%s470] sm:$0xff]
    %v472 = vld [vmem:[%s470 + $0x8] sm:$0xff]
    %v473 = vld [vmem:[%s470 + $0x10] sm:$0xff]
    %v474 = vld [vmem:[%s470 + $0x18] sm:$0xff]
    %v475 = vld [vmem:[%s6 + $0xc] sm:$0x1]
    %v476 = vperm.slane %v475, 0
    %v478 = vsel %vm169, %v469, 0
    %480 = vmatpush.msra.mxu0 0.0
    %481 = vmatpush.msra.mxu0 0.0
    %482 = vmatpush.msra.mxu0 0.0
    %483 = vmatpush.msra.mxu0 0.0
    %484 = vmatpush.msra.mxu0 0.0
    %485 = vmatpush.msra.mxu0 0.0
    %486 = vmatpush.msra.mxu0 0.0
    %487 = vmatpush.msra.mxu0 0.0
    %488 = vmatpush.msra.mxu0 0.0
    %489 = vmatpush.msra.mxu0 0.0
    %490 = vmatpush.msra.mxu0 0.0
    %491 = vmatpush.msra.mxu0 0.0
    %492 = vmatpush.msra.mxu0 %v474
    %493 = vmatpush.msra.mxu0 %v473
    %494 = vmatpush.msra.mxu0 %v472
    %495 = vmatpush.msra.mxu0 %v471
    %496 = vmatmul.f32.gmra.mxu0 %v478
    %v497 = vpop.f32.mrf.mxu0
    %v498 = vadd.f32 %v476, %v497
    %499 = vdwg.mxu0
    %v500 = vmax.f32 %v498, 0.0
    %502 = vrot.lane.b32.xlu0 %v500, 96
    %v503 = vpop.permute.xlu0 %502
    %vm505 = vcmask 1048320
    %506 = vst.msk [vmem:[#allocation2] sm:$0xff] %vm505, %v503
    %507 = vst.msk [vmem:[#allocation2 + $0x8] sm:$0xff] %vm169, %v242
    // Predicated region
    $region30: #{tpu_custom_call.1} parent=1 // pred_check
      _
    $region31: #{tpu_custom_call.1} parent=1 // pred_check_branch
      %509 = sbr.rel (0) target = $region33
    $region32: #{tpu_custom_call.1} parent=1 // pred_region
      %511 = vsyncadd [#allocation3], 0
      %s513 = sshll.u32 [#allocation2], 4
      %s514 = int_to_ptr.vmem [resolvable:$true] %s513
      %s515 = sshll.u32 %s7, 4
      %s516 = int_to_ptr.hbm [resolvable:$true] %s515
      %518 = dma.vmem_to_hbm [thread:$0]  %s514, 256, %s516, [#allocation3]
    $region33: #{tpu_custom_call.1} parent=1 // pred_fallthru
      _
    // Predicated region
    $region34: #{tpu_custom_call.1} parent=1 // pred_check
      _
    $region35: #{tpu_custom_call.1} parent=1 // pred_check_branch
      %520 = sbr.rel (0) target = $region37
    $region36: #{tpu_custom_call.1} parent=1 // pred_region
      %522 = dma.done [#allocation3], 256
    $region37: #{tpu_custom_call.1} parent=1 // pred_fallthru
      _
    %523 = vsyncpa [#allocation3], 1

</llo_original>
